<compile_context>
chip_gen: v7x
topology: tpu7x:2x2x1
jax: 0.10.0
libtpu: 0.0.40
codegen_flags: <defaults>
</compile_context>

<pallas_src>
import functools

import jax
import jax.numpy as jnp
from jax.experimental import pallas as pl
from jax.experimental.pallas import tpu as pltpu


def _round_up(x, m):
    return (x + m - 1) // m * m


def _mim_head_kernel(x_ref, w1_ref, b1_ref, gamma_ref, beta_ref,
                     w2_ref, bias_ref, o_ref, h_scratch, *, eps, h_true):
    # ---- transform stage: run once per token tile, cache in VMEM scratch ----
    @pl.when(pl.program_id(1) == 0)
    def _():
        # dense: (tm, Hp) @ (Hp, Hp), bf16 operands, f32 accumulation
        h = jnp.dot(x_ref[...], w1_ref[...], preferred_element_type=jnp.float32)
        h = h + b1_ref[...]

        # exact gelu (matches torch.nn.functional.gelu default)
        h = 0.5 * h * (1.0 + jax.lax.erf(h * 0.7071067811865476))

        hp = h.shape[-1]
        # Padded hidden columns of h are exactly zero (zero-padded x columns,
        # w1 output columns and b1), so the sum is already over the true H;
        # the centered values must be masked so variance excludes padding.
        mean = jnp.sum(h, axis=-1, keepdims=True) * (1.0 / h_true)
        if hp == h_true:
            centered = h - mean
        else:
            col = jax.lax.broadcasted_iota(jnp.int32, (1, hp), 1)
            mask = (col < h_true).astype(jnp.float32)
            centered = (h - mean) * mask
        var = jnp.sum(centered * centered, axis=-1, keepdims=True) * (1.0 / h_true)
        inv = jax.lax.rsqrt(var + eps)
        hn = centered * inv * gamma_ref[...] + beta_ref[...]
        h_scratch[...] = hn.astype(h_scratch.dtype)

    # ---- decoder stage: (tm, Hp) @ (Hp, tv), f32 accumulation ----
    logits = jnp.dot(h_scratch[...], w2_ref[...],
                     preferred_element_type=jnp.float32)
    o_ref[...] = (logits + bias_ref[...]).astype(o_ref.dtype)


def mim_head_forward(feat, params, *, eps=1e-12, compute_dtype=jnp.bfloat16,
                     tm_max=256, tv_max=1024):
    """feat: (B, N, H) float32. Returns logits (B, N, V) float32."""
    B, N, H = feat.shape
    V = params["w2"].shape[1]
    M = B * N

    # Tile / padding choices (lane-aligned; H is the un-tiled contraction dim).
    Hp = _round_up(H, 128)
    tm = min(tm_max, _round_up(M, 8))
    Mp = _round_up(M, tm)
    tv = min(tv_max, _round_up(V, 128))
    Vp = _round_up(V, tv)

    def pad2(a, rows, cols):
        return jnp.pad(a, ((0, rows - a.shape[0]), (0, cols - a.shape[1])))

    x2d   = pad2(feat.reshape(M, H).astype(compute_dtype), Mp, Hp)
    w1    = pad2(params["w1"].astype(compute_dtype), Hp, Hp)
    b1    = pad2(params["b1"], 1, Hp)
    gamma = pad2(params["gamma"], 1, Hp)
    beta  = pad2(params["beta"], 1, Hp)
    w2    = pad2(params["w2"].astype(compute_dtype), Hp, Vp)
    bias  = pad2(params["bias"], 1, Vp)

    grid = (Mp // tm, Vp // tv)

    # VMEM budget: double-buffered streamed blocks + resident weights + scratch.
    cb = jnp.dtype(compute_dtype).itemsize
    est = (2 * tm * Hp * cb          # x blocks
           + 2 * Hp * tv * cb        # w2 blocks
           + 2 * tv * 4              # bias blocks
           + 2 * tm * tv * 4         # output blocks
           + 2 * Hp * Hp * cb        # w1
           + 3 * 2 * Hp * 4          # b1, gamma, beta
           + tm * Hp * cb)           # scratch
    vmem_limit = int(min(max(2 * est + (4 << 20), 32 << 20), 96 << 20))

    cost = pl.CostEstimate(
        flops=int(2 * Mp * Hp * Hp + 2 * Mp * Hp * Vp),
        transcendentals=int(Mp * Hp),
        bytes_accessed=int(x2d.size * cb + w1.size * cb
                           + grid[0] * w2.size * cb + Mp * Vp * 4),
    )

    kernel = functools.partial(_mim_head_kernel, eps=eps, h_true=H)

    out2d = pl.pallas_call(
        kernel,
        out_shape=jax.ShapeDtypeStruct((Mp, Vp), jnp.float32),
        grid=grid,
        in_specs=[
            pl.BlockSpec((tm, Hp), lambda i, j: (i, 0)),   # x (token tile)
            pl.BlockSpec((Hp, Hp), lambda i, j: (0, 0)),   # dense weight (in,out)
            pl.BlockSpec((1, Hp),  lambda i, j: (0, 0)),   # dense bias
            pl.BlockSpec((1, Hp),  lambda i, j: (0, 0)),   # LayerNorm gamma
            pl.BlockSpec((1, Hp),  lambda i, j: (0, 0)),   # LayerNorm beta
            pl.BlockSpec((Hp, tv), lambda i, j: (0, j)),   # decoder weight (in,out)
            pl.BlockSpec((1, tv),  lambda i, j: (0, j)),   # output bias
        ],
        out_specs=pl.BlockSpec((tm, tv), lambda i, j: (i, j)),
        scratch_shapes=[pltpu.VMEM((tm, Hp), compute_dtype)],
        compiler_params=pltpu.CompilerParams(
            dimension_semantics=("parallel", "arbitrary"),
            vmem_limit_bytes=vmem_limit,
        ),
        cost_estimate=cost,
    )(x2d, w1, b1, gamma, beta, w2, bias)

    return out2d[:M, :V].reshape(B, N, V)


def init_params(key, hidden_size, vocab_size):
    k1, k2 = jax.random.split(key, 2)
    scale = 0.02
    return {
        # dense: torch weight is (H, H); stored transposed (in, out)
        "w1": scale * jax.random.normal(k1, (hidden_size, hidden_size), jnp.float32),
        "b1": jnp.zeros((1, hidden_size), jnp.float32),
        # LayerNorm init: gamma=1, beta=0
        "gamma": jnp.ones((1, hidden_size), jnp.float32),
        "beta": jnp.zeros((1, hidden_size), jnp.float32),
        # decoder: torch weight is (V, H); stored transposed (H, V)
        "w2": scale * jax.random.normal(k2, (hidden_size, vocab_size), jnp.float32),
        # self.bias = nn.Parameter(torch.zeros(vocab_size))
        "bias": jnp.zeros((1, vocab_size), jnp.float32),
    }


def _reference_forward(feat, params, eps=1e-12, compute_dtype=jnp.bfloat16):
    # Pure-JAX reference using the same bf16-operand / f32-accumulate recipe
    # as the kernel, so the comparison isolates kernel correctness.
    B, N, H = feat.shape
    x = feat.reshape(B * N, H).astype(compute_dtype)
    h = jnp.dot(x, params["w1"].astype(compute_dtype),
                preferred_element_type=jnp.float32) + params["b1"][0]
    h = 0.5 * h * (1.0 + jax.lax.erf(h * 0.7071067811865476))
    mean = h.mean(-1, keepdims=True)
    var = ((h - mean) ** 2).mean(-1, keepdims=True)
    h = (h - mean) * jax.lax.rsqrt(var + eps) * params["gamma"][0] + params["beta"][0]
    logits = jnp.dot(h.astype(compute_dtype), params["w2"].astype(compute_dtype),
                     preferred_element_type=jnp.float32) + params["bias"][0]
    return logits.reshape(B, N, -1)


if __name__ == "__main__":
    # Small shapes implied by the module: (batch, num mask preds, hidden) -> vocab
    B, N, H, V = 2, 8, 32, 48
    layer_norm_eps = 1e-12

    key = jax.random.PRNGKey(0)
    kx, kp = jax.random.split(key)
    feat = jax.random.normal(kx, (B, N, H), jnp.float32)
    params = init_params(kp, H, V)

    logits = mim_head_forward(feat, params, eps=layer_norm_eps)
    logits = jax.block_until_ready(logits)

    ref = _reference_forward(feat, params, eps=layer_norm_eps)
    assert logits.shape == (B, N, V)
    # bf16 operands / f32 accumulation in both kernel and reference; small slack
    # for MXU vs XLA accumulation order.
    assert jnp.allclose(logits, ref, atol=2e-3, rtol=2e-3), "mismatch vs reference"

    # TODO(synk): loss_fn (cross-entropy) and anneal_weights are training-time
    # utilities outside the forward pass and are not implemented as kernels.
    print("KERNEL_OK")
</pallas_src>

<mosaic_0001>
module attributes {stable_mosaic.version = 11 : i64} {
  func.func @_mim_head_kernel(%arg0: i32, %arg1: i32, %arg2: memref<16x128xbf16, #tpu.memory_space<vmem>>, %arg3: memref<128x128xbf16, #tpu.memory_space<vmem>>, %arg4: memref<1x128xf32, #tpu.memory_space<vmem>>, %arg5: memref<1x128xf32, #tpu.memory_space<vmem>>, %arg6: memref<1x128xf32, #tpu.memory_space<vmem>>, %arg7: memref<128x128xbf16, #tpu.memory_space<vmem>>, %arg8: memref<1x128xf32, #tpu.memory_space<vmem>>, %arg9: memref<16x128xf32, #tpu.memory_space<vmem>>, %arg10: memref<16x128xbf16, #tpu.memory_space<vmem>>) attributes {dimension_semantics = [#tpu.dimension_semantics<parallel>, #tpu.dimension_semantics<arbitrary>], iteration_bounds = array<i64: 1, 1>, scalar_prefetch = 0 : i64, scratch_operands = 1 : i64, tpu.core_type = #tpu.core_type<tc>, window_params = [{transform_indices = @transform_0, window_bounds = array<i64: 16, 128>}, {pipeline_mode = #tpu.pipeline_mode<synchronous>, transform_indices = @transform_1, window_bounds = array<i64: 128, 128>}, {pipeline_mode = #tpu.pipeline_mode<synchronous>, transform_indices = @transform_2, window_bounds = array<i64: 1, 128>}, {pipeline_mode = #tpu.pipeline_mode<synchronous>, transform_indices = @transform_3, window_bounds = array<i64: 1, 128>}, {pipeline_mode = #tpu.pipeline_mode<synchronous>, transform_indices = @transform_4, window_bounds = array<i64: 1, 128>}, {transform_indices = @transform_5, window_bounds = array<i64: 128, 128>}, {transform_indices = @transform_6, window_bounds = array<i64: 1, 128>}, {transform_indices = @transform_7, window_bounds = array<i64: 16, 128>}]} {
    %c0_i32 = arith.constant 0 : i32
    %0 = arith.cmpi eq, %arg1, %c0_i32 : i32
    %1 = arith.extui %0 : i1 to i32
    %c0_i32_0 = arith.constant 0 : i32
    %2 = arith.cmpi ne, %1, %c0_i32_0 : i32
    scf.if %2 {
      %c0_8 = arith.constant 0 : index
      %c0_9 = arith.constant 0 : index
      %10 = vector.load %arg2[%c0_8, %c0_9] : memref<16x128xbf16, #tpu.memory_space<vmem>>, vector<16x128xbf16>
      %c0_10 = arith.constant 0 : index
      %c0_11 = arith.constant 0 : index
      %11 = vector.load %arg3[%c0_10, %c0_11] : memref<128x128xbf16, #tpu.memory_space<vmem>>, vector<128x128xbf16>
      %cst_12 = arith.constant dense<0.000000e+00> : vector<16x128xf32>
      %12 = tpu.matmul %10, %11, %cst_12 {dimension_numbers = #tpu.dot_dimension_numbers<[1], [0], [0], [1], [0, 0, 1, 1], [], []>} : vector<16x128xbf16>, vector<128x128xbf16>, vector<16x128xf32> -> vector<16x128xf32>
      %c0_13 = arith.constant 0 : index
      %c0_14 = arith.constant 0 : index
      %13 = vector.load %arg4[%c0_13, %c0_14] : memref<1x128xf32, #tpu.memory_space<vmem>>, vector<1x128xf32>
      %14 = vector.broadcast %13 : vector<1x128xf32> to vector<16x128xf32>
      %15 = arith.addf %12, %14 : vector<16x128xf32>
      %cst_15 = arith.constant 5.000000e-01 : f32
      %16 = vector.broadcast %cst_15 : f32 to vector<16x128xf32>
      %17 = arith.mulf %16, %15 : vector<16x128xf32>
      %cst_16 = arith.constant 0.707106769 : f32
      %18 = vector.broadcast %cst_16 : f32 to vector<16x128xf32>
      %19 = arith.mulf %15, %18 : vector<16x128xf32>
      %20 = math.erf %19 : vector<16x128xf32>
      %cst_17 = arith.constant 1.000000e+00 : f32
      %21 = vector.broadcast %cst_17 : f32 to vector<16x128xf32>
      %22 = arith.addf %21, %20 : vector<16x128xf32>
      %23 = arith.mulf %17, %22 : vector<16x128xf32>
      %cst_18 = arith.constant dense<0.000000e+00> : vector<16xf32>
      %24 = vector.multi_reduction <add>, %23, %cst_18 [1] : vector<16x128xf32> to vector<16xf32>
      %25 = vector.shape_cast %24 : vector<16xf32> to vector<16x1xf32>
      %cst_19 = arith.constant 3.125000e-02 : f32
      %26 = vector.broadcast %cst_19 : f32 to vector<16x1xf32>
      %27 = arith.mulf %25, %26 : vector<16x1xf32>
      %28 = tpu.iota {dimensions = array<i32: 1>} : vector<1x128xi32>
      %c32_i32 = arith.constant 32 : i32
      %29 = vector.broadcast %c32_i32 : i32 to vector<1x128xi32>
      %30 = arith.cmpi slt, %28, %29 : vector<1x128xi32>
      %31 = arith.extui %30 : vector<1x128xi1> to vector<1x128xi32>
      %32 = arith.sitofp %31 : vector<1x128xi32> to vector<1x128xf32>
      %33 = vector.broadcast %27 : vector<16x1xf32> to vector<16x128xf32>
      %34 = arith.subf %23, %33 : vector<16x128xf32>
      %35 = vector.broadcast %32 : vector<1x128xf32> to vector<16x128xf32>
      %36 = arith.mulf %34, %35 : vector<16x128xf32>
      %37 = arith.mulf %36, %36 : vector<16x128xf32>
      %cst_20 = arith.constant dense<0.000000e+00> : vector<16xf32>
      %38 = vector.multi_reduction <add>, %37, %cst_20 [1] : vector<16x128xf32> to vector<16xf32>
      %39 = vector.shape_cast %38 : vector<16xf32> to vector<16x1xf32>
      %cst_21 = arith.constant 3.125000e-02 : f32
      %40 = vector.broadcast %cst_21 : f32 to vector<16x1xf32>
      %41 = arith.mulf %39, %40 : vector<16x1xf32>
      %cst_22 = arith.constant 9.99999996E-13 : f32
      %42 = vector.broadcast %cst_22 : f32 to vector<16x1xf32>
      %43 = arith.addf %41, %42 : vector<16x1xf32>
      %44 = math.rsqrt %43 : vector<16x1xf32>
      %45 = vector.broadcast %44 : vector<16x1xf32> to vector<16x128xf32>
      %46 = arith.mulf %36, %45 : vector<16x128xf32>
      %c0_23 = arith.constant 0 : index
      %c0_24 = arith.constant 0 : index
      %47 = vector.load %arg5[%c0_23, %c0_24] : memref<1x128xf32, #tpu.memory_space<vmem>>, vector<1x128xf32>
      %48 = vector.broadcast %47 : vector<1x128xf32> to vector<16x128xf32>
      %49 = arith.mulf %46, %48 : vector<16x128xf32>
      %c0_25 = arith.constant 0 : index
      %c0_26 = arith.constant 0 : index
      %50 = vector.load %arg6[%c0_25, %c0_26] : memref<1x128xf32, #tpu.memory_space<vmem>>, vector<1x128xf32>
      %51 = vector.broadcast %50 : vector<1x128xf32> to vector<16x128xf32>
      %52 = arith.addf %49, %51 : vector<16x128xf32>
      %53 = arith.truncf %52 : vector<16x128xf32> to vector<16x128xbf16>
      %c0_27 = arith.constant 0 : index
      %c0_28 = arith.constant 0 : index
      %54 = vector.load %arg10[%c0_27, %c0_28] : memref<16x128xbf16, #tpu.memory_space<vmem>>, vector<16x128xbf16>
      tpu.vector_store %arg10[%c0_27, %c0_28], %53 {strides = array<i32>} : memref<16x128xbf16, #tpu.memory_space<vmem>>, vector<16x128xbf16>,
    } else {
    }
    %c0 = arith.constant 0 : index
    %c0_1 = arith.constant 0 : index
    %3 = vector.load %arg10[%c0, %c0_1] : memref<16x128xbf16, #tpu.memory_space<vmem>>, vector<16x128xbf16>
    %c0_2 = arith.constant 0 : index
    %c0_3 = arith.constant 0 : index
    %4 = vector.load %arg7[%c0_2, %c0_3] : memref<128x128xbf16, #tpu.memory_space<vmem>>, vector<128x128xbf16>
    %cst = arith.constant dense<0.000000e+00> : vector<16x128xf32>
    %5 = tpu.matmul %3, %4, %cst {dimension_numbers = #tpu.dot_dimension_numbers<[1], [0], [0], [1], [0, 0, 1, 1], [], []>} : vector<16x128xbf16>, vector<128x128xbf16>, vector<16x128xf32> -> vector<16x128xf32>
    %c0_4 = arith.constant 0 : index
    %c0_5 = arith.constant 0 : index
    %6 = vector.load %arg8[%c0_4, %c0_5] : memref<1x128xf32, #tpu.memory_space<vmem>>, vector<1x128xf32>
    %7 = vector.broadcast %6 : vector<1x128xf32> to vector<16x128xf32>
    %8 = arith.addf %5, %7 : vector<16x128xf32>
    %c0_6 = arith.constant 0 : index
    %c0_7 = arith.constant 0 : index
    %9 = vector.load %arg9[%c0_6, %c0_7] : memref<16x128xf32, #tpu.memory_space<vmem>>, vector<16x128xf32>
    tpu.vector_store %arg9[%c0_6, %c0_7], %8 {strides = array<i32>} : memref<16x128xf32, #tpu.memory_space<vmem>>, vector<16x128xf32>,
    return
  }
  func.func @transform_0(%arg0: i32, %arg1: i32) -> (i32, i32) {
    %c0_i32 = arith.constant 0 : i32
    %c0_i32_0 = arith.constant 0 : i32
    return %arg0, %c0_i32 : i32, i32
  }
  func.func @transform_1(%arg0: i32, %arg1: i32) -> (i32, i32) {
    %c0_i32 = arith.constant 0 : i32
    %c0_i32_0 = arith.constant 0 : i32
    %c0_i32_1 = arith.constant 0 : i32
    return %c0_i32, %c0_i32_0 : i32, i32
  }
  func.func @transform_2(%arg0: i32, %arg1: i32) -> (i32, i32) {
    %c0_i32 = arith.constant 0 : i32
    %c0_i32_0 = arith.constant 0 : i32
    %c0_i32_1 = arith.constant 0 : i32
    return %c0_i32, %c0_i32_0 : i32, i32
  }
  func.func @transform_3(%arg0: i32, %arg1: i32) -> (i32, i32) {
    %c0_i32 = arith.constant 0 : i32
    %c0_i32_0 = arith.constant 0 : i32
    %c0_i32_1 = arith.constant 0 : i32
    return %c0_i32, %c0_i32_0 : i32, i32
  }
  func.func @transform_4(%arg0: i32, %arg1: i32) -> (i32, i32) {
    %c0_i32 = arith.constant 0 : i32
    %c0_i32_0 = arith.constant 0 : i32
    %c0_i32_1 = arith.constant 0 : i32
    return %c0_i32, %c0_i32_0 : i32, i32
  }
  func.func @transform_5(%arg0: i32, %arg1: i32) -> (i32, i32) {
    %c0_i32 = arith.constant 0 : i32
    %c0_i32_0 = arith.constant 0 : i32
    return %c0_i32, %arg1 : i32, i32
  }
  func.func @transform_6(%arg0: i32, %arg1: i32) -> (i32, i32) {
    %c0_i32 = arith.constant 0 : i32
    %c0_i32_0 = arith.constant 0 : i32
    return %c0_i32, %arg1 : i32, i32
  }
  func.func @transform_7(%arg0: i32, %arg1: i32) -> (i32, i32) {
    %c0_i32 = arith.constant 0 : i32
    return %arg0, %arg1 : i32, i32
  }
}

</mosaic_0001>

<llo_original>
// kernel: tpu_custom_call.1
$region0: #{tpu_custom_call.1}
  #allocation0 [shape = 'u32[]', space=smem, size = 0x4, offset = 0x4, fixed_abs, tag = 'smem constant byte address 0x4 - core index']
  #allocation1 [shape = 'u32[144,128]{1,0:T(1,128)}', space=vmem, size = 0x12000, scoped, tag = 'internal scratch']
  #allocation2 [shape = 'bf16[16,128]{1,0:T(16,128)(2,1)}', space=vmem, size = 0x1000, scoped, tag = 'scratch operand']
  %s0 = inlined_call_operand.hbm [shape: bf16[16,128], index: 0, kind: input, shape index: {}]
  %s1 = inlined_call_operand.hbm [shape: bf16[128,128], index: 1, kind: input, shape index: {}]
  %s2 = inlined_call_operand.vmem [shape: f32[1,128], index: 2, kind: input, shape index: {}]
  %s3 = inlined_call_operand.vmem [shape: f32[1,128], index: 3, kind: input, shape index: {}]
  %s4 = inlined_call_operand.vmem [shape: f32[1,128], index: 4, kind: input, shape index: {}]
  %s5 = inlined_call_operand.hbm [shape: bf16[128,128], index: 5, kind: input, shape index: {}]
  %s6 = inlined_call_operand.vmem [shape: f32[1,128], index: 6, kind: input, shape index: {}]
  %s7 = inlined_call_operand.hbm [shape: f32[16,128], index: 7, kind: output, shape index: {}]
  %s8 = sld [smem:[#allocation0]]
  $region54: #{tpu_custom_call.1} parent=0
    _
  %s10 = ssub.s32 1, %s8
  %s11 = scalar_select 0, %s10, %s8
  $region1: #{tpu_custom_call.1} parent=0
    #allocation3 [shape = 'u8[4096]{0}', space=vmem, size = 0x1000, scoped, tag = 'input window, operand 0, single buffered']
    #allocation4 [shape = 's32[1]{0}', space=sflag, size = 0x4, scoped, tag = 'scoped memory for tpu_custom_call.1']
    #allocation5 [shape = 's32[1]{0}', space=sflag, size = 0x4, scoped, tag = 'scoped memory for tpu_custom_call.1']
    #allocation6 [shape = 'u8[32768]{0}', space=vmem, size = 0x8000, scoped, tag = 'input window, operand 1, single buffered']
    #allocation7 [shape = 's32[1]{0}', space=sflag, size = 0x4, scoped, tag = 'scoped memory for tpu_custom_call.1']
    #allocation8 [shape = 'u8[32768]{0}', space=vmem, size = 0x8000, scoped, tag = 'input window, operand 5, single buffered']
    #allocation9 [shape = 'u8[8192]{0}', space=vmem, size = 0x2000, scoped, tag = 'output window, operand 0, single buffered']
    %12 = vsyncpa [#allocation4], 0
    %13 = vsyncpa [#allocation7], 0
    %14 = vsyncpa [#allocation5], 0
    // Predicated region
    $region2: #{tpu_custom_call.1} parent=1 // pred_check
      _
    $region3: #{tpu_custom_call.1} parent=1 // pred_check_branch
      %16 = sbr.rel (0) target = $region5
    $region4: #{tpu_custom_call.1} parent=1 // pred_region
      %s18 = ssub.s32 128, 128
      %19 = vsyncadd [#allocation4], %s18
      %s20 = sshll.u32 [#allocation3], 4
      %s21 = int_to_ptr.vmem [resolvable:$true] %s20
      %26 = dma.hbm_to_vmem [thread:$0]  %s0, 128, %s21, [#allocation4], 64, 64, 4
    $region5: #{tpu_custom_call.1} parent=1 // pred_fallthru
      _
    // Predicated region
    $region6: #{tpu_custom_call.1} parent=1 // pred_check
      _
    $region7: #{tpu_custom_call.1} parent=1 // pred_check_branch
      %28 = sbr.rel (0) target = $region9
    $region8: #{tpu_custom_call.1} parent=1 // pred_region
      %s30 = ssub.s32 1024, 1024
      %31 = vsyncadd [#allocation7], %s30
      %s32 = sshll.u32 [#allocation6], 4
      %s33 = int_to_ptr.vmem [resolvable:$true] %s32
      %38 = dma.hbm_to_vmem [thread:$0]  %s1, 1024, %s33, [#allocation7], 64, 64, 4
    $region9: #{tpu_custom_call.1} parent=1 // pred_fallthru
      _
    // Predicated region
    $region10: #{tpu_custom_call.1} parent=1 // pred_check
      _
    $region11: #{tpu_custom_call.1} parent=1 // pred_check_branch
      %40 = sbr.rel (0) target = $region13
    $region12: #{tpu_custom_call.1} parent=1 // pred_region
      _
    $region13: #{tpu_custom_call.1} parent=1 // pred_fallthru
      _
    // Predicated region
    $region14: #{tpu_custom_call.1} parent=1 // pred_check
      _
    $region15: #{tpu_custom_call.1} parent=1 // pred_check_branch
      %42 = sbr.rel (0) target = $region17
    $region16: #{tpu_custom_call.1} parent=1 // pred_region
      _
    $region17: #{tpu_custom_call.1} parent=1 // pred_fallthru
      _
    // Predicated region
    $region18: #{tpu_custom_call.1} parent=1 // pred_check
      _
    $region19: #{tpu_custom_call.1} parent=1 // pred_check_branch
      %44 = sbr.rel (0) target = $region21
    $region20: #{tpu_custom_call.1} parent=1 // pred_region
      _
    $region21: #{tpu_custom_call.1} parent=1 // pred_fallthru
      _
    // Predicated region
    $region22: #{tpu_custom_call.1} parent=1 // pred_check
      _
    $region23: #{tpu_custom_call.1} parent=1 // pred_check_branch
      %46 = sbr.rel (0) target = $region25
    $region24: #{tpu_custom_call.1} parent=1 // pred_region
      %s48 = ssub.s32 1024, 1024
      %49 = vsyncadd [#allocation7], %s48
      %s50 = sshll.u32 [#allocation8], 4
      %s51 = int_to_ptr.vmem [resolvable:$true] %s50
      %56 = dma.hbm_to_vmem [thread:$0]  %s5, 1024, %s51, [#allocation7], 64, 64, 4
    $region25: #{tpu_custom_call.1} parent=1 // pred_fallthru
      _
    // Predicated region
    $region26: #{tpu_custom_call.1} parent=1 // pred_check
      _
    $region27: #{tpu_custom_call.1} parent=1 // pred_check_branch
      %58 = sbr.rel (0) target = $region29
    $region28: #{tpu_custom_call.1} parent=1 // pred_region
      _
    $region29: #{tpu_custom_call.1} parent=1 // pred_fallthru
      _
    // Predicated region
    $region30: #{tpu_custom_call.1} parent=1 // pred_check
      _
    $region31: #{tpu_custom_call.1} parent=1 // pred_check_branch
      %60 = sbr.rel (0) target = $region33
    $region32: #{tpu_custom_call.1} parent=1 // pred_region
      %61 = dma.done [#allocation4], 128
    $region33: #{tpu_custom_call.1} parent=1 // pred_fallthru
      _
    // Predicated region
    $region34: #{tpu_custom_call.1} parent=1 // pred_check
      _
    $region35: #{tpu_custom_call.1} parent=1 // pred_check_branch
      %63 = sbr.rel (0) target = $region37
    $region36: #{tpu_custom_call.1} parent=1 // pred_region
      %64 = dma.done [#allocation7], 1024
    $region37: #{tpu_custom_call.1} parent=1 // pred_fallthru
      _
    // Predicated region
    $region38: #{tpu_custom_call.1} parent=1 // pred_check
      _
    $region39: #{tpu_custom_call.1} parent=1 // pred_check_branch
      %66 = sbr.rel (0) target = $region41
    $region40: #{tpu_custom_call.1} parent=1 // pred_region
      %67 = dma.done [#allocation7], 1024
    $region41: #{tpu_custom_call.1} parent=1 // pred_fallthru
      _
    %p69 = scmp.eq.s32.totalorder 0, 0
    // Predicated region
    $region42: #{tpu_custom_call.1} parent=1 // pred_check
      %p70 = pneg %p69
    $region43: #{tpu_custom_call.1} parent=1 // pred_check_branch
      %72 = sbr.rel (%p70) target = $region45
    $region44: #{tpu_custom_call.1} parent=1 // pred_region
      %v73 = vld [vmem:[#allocation3] sm:$0xf]
      %v74 = vld [vmem:[#allocation3 + $0x4] sm:$0xf]
      %v75 = vld [vmem:[#allocation6] sm:$0xf]
      %v76 = vld [vmem:[#allocation6 + $0x4] sm:$0xf]
      %v77 = vld [vmem:[#allocation6 + $0x8] sm:$0xf]
      %v78 = vld [vmem:[#allocation6 + $0xc] sm:$0xf]
      %v79 = vld [vmem:[#allocation6 + $0x10] sm:$0xf]
      %v80 = vld [vmem:[#allocation6 + $0x14] sm:$0xf]
      %v81 = vld [vmem:[#allocation6 + $0x18] sm:$0xf]
      %v82 = vld [vmem:[#allocation6 + $0x1c] sm:$0xf]
      %v83 = vld [vmem:[#allocation6 + $0x20] sm:$0xf]
      %v84 = vld [vmem:[#allocation6 + $0x24] sm:$0xf]
      %v85 = vld [vmem:[#allocation6 + $0x28] sm:$0xf]
      %v86 = vld [vmem:[#allocation6 + $0x2c] sm:$0xf]
      %v87 = vld [vmem:[#allocation6 + $0x30] sm:$0xf]
      %v88 = vld [vmem:[#allocation6 + $0x34] sm:$0xf]
      %v89 = vld [vmem:[#allocation6 + $0x38] sm:$0xf]
      %v90 = vld [vmem:[#allocation6 + $0x3c] sm:$0xf]
      %v91 = vld [vmem:[%s2] sm:$0x1]
      %v93 = vlaneseq
      %v94 = vshrl.u32 %v93, 7
      %v95 = vsub.s32 0, %v94
      %v96 = vrot.slane %v91, %v95
      %v100 = vunpack.c.l.b16 %v73
      %v101 = vunpack.c.l.b16 %v74
      %v102 = vpack.c.b16 %v101, %v100
      %v120 = vunpack.c.l.b16 %v75
      %v121 = vunpack.c.l.b16 %v76
      %v122 = vunpack.c.l.b16 %v77
      %v123 = vunpack.c.l.b16 %v78
      %v124 = vunpack.c.l.b16 %v79
      %v125 = vunpack.c.l.b16 %v80
      %v126 = vunpack.c.l.b16 %v81
      %v127 = vunpack.c.l.b16 %v82
      %v128 = vunpack.c.l.b16 %v83
      %v129 = vunpack.c.l.b16 %v84
      %v130 = vunpack.c.l.b16 %v85
      %v131 = vunpack.c.l.b16 %v86
      %v132 = vunpack.c.l.b16 %v87
      %v133 = vunpack.c.l.b16 %v88
      %v134 = vunpack.c.l.b16 %v89
      %v135 = vunpack.c.l.b16 %v90
      %v136 = vpack.c.b16 %v121, %v120
      %v137 = vpack.c.b16 %v123, %v122
      %v138 = vpack.c.b16 %v125, %v124
      %v139 = vpack.c.b16 %v127, %v126
      %v140 = vpack.c.b16 %v129, %v128
      %v141 = vpack.c.b16 %v131, %v130
      %v142 = vpack.c.b16 %v133, %v132
      %v143 = vpack.c.b16 %v135, %v134
      %152 = vmatprep.subr.bf16.mxu0 0
      %153 = vmatpush1.bf16.msra.mxu0 %v136
      %154 = vmatprep.subr.bf16.mxu0 0
      %155 = vmatpush1.bf16.msra.mxu0 %v137
      %156 = vmatprep.subr.bf16.mxu0 0
      %157 = vmatpush1.bf16.msra.mxu0 %v138
      %158 = vmatprep.subr.bf16.mxu0 0
      %159 = vmatpush1.bf16.msra.mxu0 %v139
      %160 = vmatprep.subr.bf16.mxu0 0
      %161 = vmatpush1.bf16.msra.mxu0 %v140
      %162 = vmatprep.subr.bf16.mxu0 0
      %163 = vmatpush1.bf16.msra.mxu0 %v141
      %164 = vmatprep.subr.bf16.mxu0 0
      %165 = vmatpush1.bf16.msra.mxu0 %v142
      %166 = vmatprep.subr.bf16.mxu0 0
      %167 = vmatpush1.bf16.msra.mxu0 %v143
      %168 = vmatprep.subr.bf16.mxu0 0
      %169 = vmatpush1.bf16.msra.mxu0 0
      %170 = vmatprep.subr.bf16.mxu0 0
      %171 = vmatpush1.bf16.msra.mxu0 0
      %172 = vmatprep.subr.bf16.mxu0 0
      %173 = vmatpush1.bf16.msra.mxu0 0
      %174 = vmatprep.subr.bf16.mxu0 0
      %175 = vmatpush1.bf16.msra.mxu0 0
      %176 = vmatprep.subr.bf16.mxu0 0
      %177 = vmatpush1.bf16.msra.mxu0 0
      %178 = vmatprep.subr.bf16.mxu0 0
      %179 = vmatpush1.bf16.msra.mxu0 0
      %180 = vmatprep.subr.bf16.mxu0 0
      %181 = vmatpush1.bf16.msra.mxu0 0
      %182 = vmatprep.subr.bf16.mxu0 0
      %183 = vmatpush1.bf16.msra.mxu0 0
      %184 = vmatprep.mubr.bf16.mxu0 0
      %185 = vmatmul.mubr.bf16.gmra.mrb[0].mxu0 %v102
      %v186 = vpop.f32.mrb[0].mxu0
      %v187 = vadd.f32 %v96, %v186
      %v188 = vpop.f32.mrb[0].mxu0
      %v189 = vpop.f32.mrb[0].mxu0
      %v190 = vadd.f32 %v96, %v189
      %v191 = vpop.f32.mrb[0].mxu0
      %192 = vdwg.mxu0
      %v193 = vmul.f32 %v187, 0.5
      %v194 = vmul.f32 %v190, 0.5
      %v195 = vmul.f32 %v187, 0.70710677
      %v196 = vmul.f32 %v190, 0.70710677
      %v197 = verf.f32.pop %v195
      %v198 = verf.f32.pop %v196
      %v199 = vadd.f32 %v197, 1.0
      %v200 = vadd.f32 %v198, 1.0
      %v201 = vmul.f32 %v193, %v199
      %v202 = vmul.f32 %v194, %v200
      %203 = vadd.xlane.f32.xlu0 %v201
      %v204 = vpop.xlane.xlu0 %203
      %205 = vadd.xlane.f32.xlu0 %v202
      %v206 = vpop.xlane.xlu0 %205
      %v207 = vmul.f32 %v204, 0.03125
      %v208 = vmul.f32 %v206, 0.03125
      %v209 = vlaneseq
      %v210 = vand.u32 %v209, 127
      %vm211 = vcmp.lt.s32.totalorder %v210, 32
      %v212 = vsel %vm211, 1, 0
      %v213 = vcvt.s32.f32 %v212
      %v214 = vsub.f32 %v201, %v207
      %v215 = vsub.f32 %v202, %v208
      %v216 = vmul.f32 %v214, %v213
      %v217 = vmul.f32 %v215, %v213
      %v218 = vmul.f32 %v216, %v216
      %v219 = vmul.f32 %v217, %v217
      %220 = vadd.xlane.f32.xlu0 %v218
      %v221 = vpop.xlane.xlu0 %220
      %222 = vadd.xlane.f32.xlu0 %v219
      %v223 = vpop.xlane.xlu0 %222
      %v224 = vmul.f32 %v221, 0.03125
      %v225 = vmul.f32 %v223, 0.03125
      %v226 = vadd.f32 %v224, 1e-12
      %v227 = vadd.f32 %v225, 1e-12
      %v228 = vrsqrt.pop %v226
      %v229 = vrsqrt.pop %v227
      %v230 = vmul.f32 %v216, %v228
      %v231 = vmul.f32 %v217, %v229
      %v232 = vld [vmem:[%s3] sm:$0x1]
      %v234 = vlaneseq
      %v235 = vshrl.u32 %v234, 7
      %v236 = vsub.s32 0, %v235
      %v237 = vrot.slane %v232, %v236
      %v239 = vmul.f32 %v230, %v237
      %v240 = vmul.f32 %v231, %v237
      %v241 = vld [vmem:[%s4] sm:$0x1]
      %v243 = vlaneseq
      %v244 = vshrl.u32 %v243, 7
      %v245 = vsub.s32 0, %v244
      %v246 = vrot.slane %v241, %v245
      %v248 = vadd.f32 %v239, %v246
      %v249 = vadd.f32 %v240, %v246
      %v250 = vpack.c.bf16 %v249, %v248
      %251 = vst [vmem:[#allocation2] sm:$0xff] %v250
    $region45: #{tpu_custom_call.1} parent=1 // pred_fallthru
      _
    %v252 = vld [vmem:[#allocation2] sm:$0xff]
    %v253 = vld [vmem:[#allocation8] sm:$0xf]
    %v254 = vld [vmem:[#allocation8 + $0x4] sm:$0xf]
    %v255 = vld [vmem:[#allocation8 + $0x8] sm:$0xf]
    %v256 = vld [vmem:[#allocation8 + $0xc] sm:$0xf]
    %v257 = vld [vmem:[#allocation8 + $0x10] sm:$0xf]
    %v258 = vld [vmem:[#allocation8 + $0x14] sm:$0xf]
    %v259 = vld [vmem:[#allocation8 + $0x18] sm:$0xf]
    %v260 = vld [vmem:[#allocation8 + $0x1c] sm:$0xf]
    %v261 = vld [vmem:[#allocation8 + $0x20] sm:$0xf]
    %v262 = vld [vmem:[#allocation8 + $0x24] sm:$0xf]
    %v263 = vld [vmem:[#allocation8 + $0x28] sm:$0xf]
    %v264 = vld [vmem:[#allocation8 + $0x2c] sm:$0xf]
    %v265 = vld [vmem:[#allocation8 + $0x30] sm:$0xf]
    %v266 = vld [vmem:[#allocation8 + $0x34] sm:$0xf]
    %v267 = vld [vmem:[#allocation8 + $0x38] sm:$0xf]
    %v268 = vld [vmem:[#allocation8 + $0x3c] sm:$0xf]
    %v269 = vld [vmem:[%s6] sm:$0x1]
    %v271 = vlaneseq
    %v272 = vshrl.u32 %v271, 7
    %v273 = vsub.s32 0, %v272
    %v274 = vrot.slane %v269, %v273
    %v292 = vunpack.c.l.b16 %v253
    %v293 = vunpack.c.l.b16 %v254
    %v294 = vunpack.c.l.b16 %v255
    %v295 = vunpack.c.l.b16 %v256
    %v296 = vunpack.c.l.b16 %v257
    %v297 = vunpack.c.l.b16 %v258
    %v298 = vunpack.c.l.b16 %v259
    %v299 = vunpack.c.l.b16 %v260
    %v300 = vunpack.c.l.b16 %v261
    %v301 = vunpack.c.l.b16 %v262
    %v302 = vunpack.c.l.b16 %v263
    %v303 = vunpack.c.l.b16 %v264
    %v304 = vunpack.c.l.b16 %v265
    %v305 = vunpack.c.l.b16 %v266
    %v306 = vunpack.c.l.b16 %v267
    %v307 = vunpack.c.l.b16 %v268
    %v308 = vpack.c.b16 %v293, %v292
    %v309 = vpack.c.b16 %v295, %v294
    %v310 = vpack.c.b16 %v297, %v296
    %v311 = vpack.c.b16 %v299, %v298
    %v312 = vpack.c.b16 %v301, %v300
    %v313 = vpack.c.b16 %v303, %v302
    %v314 = vpack.c.b16 %v305, %v304
    %v315 = vpack.c.b16 %v307, %v306
    %324 = vmatprep.subr.bf16.mxu0 0
    %325 = vmatpush1.bf16.msra.mxu0 %v308
    %326 = vmatprep.subr.bf16.mxu0 0
    %327 = vmatpush1.bf16.msra.mxu0 %v309
    %328 = vmatprep.subr.bf16.mxu0 0
    %329 = vmatpush1.bf16.msra.mxu0 %v310
    %330 = vmatprep.subr.bf16.mxu0 0
    %331 = vmatpush1.bf16.msra.mxu0 %v311
    %332 = vmatprep.subr.bf16.mxu0 0
    %333 = vmatpush1.bf16.msra.mxu0 %v312
    %334 = vmatprep.subr.bf16.mxu0 0
    %335 = vmatpush1.bf16.msra.mxu0 %v313
    %336 = vmatprep.subr.bf16.mxu0 0
    %337 = vmatpush1.bf16.msra.mxu0 %v314
    %338 = vmatprep.subr.bf16.mxu0 0
    %339 = vmatpush1.bf16.msra.mxu0 %v315
    %340 = vmatprep.subr.bf16.mxu0 0
    %341 = vmatpush1.bf16.msra.mxu0 0
    %342 = vmatprep.subr.bf16.mxu0 0
    %343 = vmatpush1.bf16.msra.mxu0 0
    %344 = vmatprep.subr.bf16.mxu0 0
    %345 = vmatpush1.bf16.msra.mxu0 0
    %346 = vmatprep.subr.bf16.mxu0 0
    %347 = vmatpush1.bf16.msra.mxu0 0
    %348 = vmatprep.subr.bf16.mxu0 0
    %349 = vmatpush1.bf16.msra.mxu0 0
    %350 = vmatprep.subr.bf16.mxu0 0
    %351 = vmatpush1.bf16.msra.mxu0 0
    %352 = vmatprep.subr.bf16.mxu0 0
    %353 = vmatpush1.bf16.msra.mxu0 0
    %354 = vmatprep.subr.bf16.mxu0 0
    %355 = vmatpush1.bf16.msra.mxu0 0
    %356 = vmatprep.mubr.bf16.mxu0 0
    %357 = vmatmul.mubr.bf16.gmra.mrb[0].mxu0 %v252
    %v358 = vpop.f32.mrb[0].mxu0
    %v359 = vadd.f32 %v274, %v358
    %v360 = vpop.f32.mrb[0].mxu0
    %v361 = vpop.f32.mrb[0].mxu0
    %v362 = vadd.f32 %v274, %v361
    %v363 = vpop.f32.mrb[0].mxu0
    %364 = vdwg.mxu0
    %365 = vst [vmem:[#allocation9] sm:$0xff] %v359
    %366 = vst [vmem:[#allocation9 + $0x8] sm:$0xff] %v362
    // Predicated region
    $region46: #{tpu_custom_call.1} parent=1 // pred_check
      _
    $region47: #{tpu_custom_call.1} parent=1 // pred_check_branch
      %368 = sbr.rel (0) target = $region49
    $region48: #{tpu_custom_call.1} parent=1 // pred_region
      %s370 = ssub.s32 256, 256
      %371 = vsyncadd [#allocation5], %s370
      %s372 = sshll.u32 [#allocation9], 4
      %s373 = int_to_ptr.vmem [resolvable:$true] %s372
      %378 = dma.vmem_to_hbm [thread:$0]  %s373, 256, %s7, [#allocation5], 128, 128, 8
    $region49: #{tpu_custom_call.1} parent=1 // pred_fallthru
      _
    // Predicated region
    $region50: #{tpu_custom_call.1} parent=1 // pred_check
      _
    $region51: #{tpu_custom_call.1} parent=1 // pred_check_branch
      %380 = sbr.rel (0) target = $region53
    $region52: #{tpu_custom_call.1} parent=1 // pred_region
      %381 = dma.done [#allocation5], 256
    $region53: #{tpu_custom_call.1} parent=1 // pred_fallthru
      _
    %382 = vsyncpa [#allocation4], 1
    %383 = vsyncpa [#allocation7], 1
    %384 = vsyncpa [#allocation5], 1

</llo_original>
